<compile_context>
chip_gen: v7x
topology: tpu7x:2x2x1
jax: 0.10.0
libtpu: 0.0.40
codegen_flags: <defaults>
</compile_context>

<pallas_src>
import functools

import jax
import jax.numpy as jnp
from jax.experimental import pallas as pl
from jax.experimental.pallas import tpu as pltpu


# --------------------------------------------------------------------------
# Kernels
# --------------------------------------------------------------------------
def _pad_kernel_lane_bc(x_ref, o_ref, *, H, W, Hp, Wp):
    """Lane-dense layout: x_ref (H, W, TBC) -> o_ref (Hout, Wout, TBC)."""
    Hout = H + 2 * Hp
    Wout = W + 2 * Wp
    n = x_ref.shape[-1]

    # Interior slab: the bulk of the traffic, a straight vld->vst stream.
    o_ref[Hp:Hp + H, Wp:Wp + W, :] = x_ref[...]

    # Left / right column bands (replicate first / last W column).
    if Wp > 0:
        o_ref[Hp:Hp + H, 0:Wp, :] = jnp.broadcast_to(
            x_ref[:, 0:1, :], (H, Wp, n))
        o_ref[Hp:Hp + H, Wp + W:Wout, :] = jnp.broadcast_to(
            x_ref[:, W - 1:W, :], (H, Wp, n))

    # Top / bottom row bands (replicate first / last H row).
    if Hp > 0:
        o_ref[0:Hp, Wp:Wp + W, :] = jnp.broadcast_to(
            x_ref[0:1, :, :], (Hp, W, n))
        o_ref[Hp + H:Hout, Wp:Wp + W, :] = jnp.broadcast_to(
            x_ref[H - 1:H, :, :], (Hp, W, n))

    # Four corners.
    if Hp > 0 and Wp > 0:
        o_ref[0:Hp, 0:Wp, :] = jnp.broadcast_to(
            x_ref[0:1, 0:1, :], (Hp, Wp, n))
        o_ref[0:Hp, Wp + W:Wout, :] = jnp.broadcast_to(
            x_ref[0:1, W - 1:W, :], (Hp, Wp, n))
        o_ref[Hp + H:Hout, 0:Wp, :] = jnp.broadcast_to(
            x_ref[H - 1:H, 0:1, :], (Hp, Wp, n))
        o_ref[Hp + H:Hout, Wp + W:Wout, :] = jnp.broadcast_to(
            x_ref[H - 1:H, W - 1:W, :], (Hp, Wp, n))


def _pad_kernel_bc_lead(x_ref, o_ref, *, H, W, Hp, Wp):
    """Plane-major layout (wide images): (TBC, H, W) -> (TBC, Hout, Wout)."""
    Hout = H + 2 * Hp
    Wout = W + 2 * Wp
    n = x_ref.shape[0]

    o_ref[:, Hp:Hp + H, Wp:Wp + W] = x_ref[...]

    if Wp > 0:
        o_ref[:, Hp:Hp + H, 0:Wp] = jnp.broadcast_to(
            x_ref[:, :, 0:1], (n, H, Wp))
        o_ref[:, Hp:Hp + H, Wp + W:Wout] = jnp.broadcast_to(
            x_ref[:, :, W - 1:W], (n, H, Wp))

    if Hp > 0:
        o_ref[:, 0:Hp, Wp:Wp + W] = jnp.broadcast_to(
            x_ref[:, 0:1, :], (n, Hp, W))
        o_ref[:, Hp + H:Hout, Wp:Wp + W] = jnp.broadcast_to(
            x_ref[:, H - 1:H, :], (n, Hp, W))

    if Hp > 0 and Wp > 0:
        o_ref[:, 0:Hp, 0:Wp] = jnp.broadcast_to(
            x_ref[:, 0:1, 0:1], (n, Hp, Wp))
        o_ref[:, 0:Hp, Wp + W:Wout] = jnp.broadcast_to(
            x_ref[:, 0:1, W - 1:W], (n, Hp, Wp))
        o_ref[:, Hp + H:Hout, 0:Wp] = jnp.broadcast_to(
            x_ref[:, H - 1:H, 0:1], (n, Hp, Wp))
        o_ref[:, Hp + H:Hout, Wp + W:Wout] = jnp.broadcast_to(
            x_ref[:, H - 1:H, W - 1:W], (n, Hp, Wp))


# --------------------------------------------------------------------------
# Wrapper
# --------------------------------------------------------------------------
def _vmem_capacity_bytes():
    try:
        return int(pltpu.get_tpu_info().vmem_capacity_bytes)
    except Exception:
        # Conservative fallback: v7x per-TensorCore VMEM.
        return 64 * 1024 * 1024


def same_padding(x, conv_stride=1, conv_ksize=3):
    """Pallas equivalent of Same_Padding.forward for NCHW `x`."""
    B, C, H, W = x.shape
    # Same formula as the PyTorch module (static Python int arithmetic).
    Hp = int((H * (conv_stride - 1) - conv_stride + conv_ksize) / 2)
    Wp = int((W * (conv_stride - 1) - conv_stride + conv_ksize) / 2)
    assert Hp >= 0 and Wp >= 0, (
        f"negative 'same' padding (Hp={Hp}, Wp={Wp}) is not supported")

    Hout, Wout = H + 2 * Hp, W + 2 * Wp
    BC = B * C
    itemsize = jnp.dtype(x.dtype).itemsize
    per_plane_bytes = (H * W + Hout * Wout) * itemsize

    # Generation-aware budget for the double-buffered in+out block footprint.
    vmem_cap = _vmem_capacity_bytes()
    vmem_budget = min(28 << 20, (vmem_cap * 3) // 8)   # ~24 MiB v7x, ~28 MiB v5e/v6e
    vmem_limit = int(min(vmem_cap, vmem_budget + (16 << 20)))
    budget_tbc = max(1, vmem_budget // (2 * per_plane_bytes))

    compiler_params = pltpu.CompilerParams(
        dimension_semantics=("parallel",),
        vmem_limit_bytes=vmem_limit)
    cost = pl.CostEstimate(
        flops=0, transcendentals=0, bytes_accessed=BC * per_plane_bytes)

    LANE = 128
    if W < LANE:
        # ---- Lane-dense path: B*C on the lane axis. -------------------------
        # (H, W, BC); the wrapper transpose is pure layout plumbing.
        x_l = x.reshape(BC, H, W).transpose(1, 2, 0)

        if BC <= LANE:
            tbc = BC                       # full lane dim (single grid step)
        else:
            # Lane tiling: a multiple of 128, capped so the grid has at least
            # two steps (keeps both v7x TensorCores busy).
            tbc = max(LANE, (min(budget_tbc, BC) // LANE) * LANE)
            two_step_cap = -(-((BC + 1) // 2) // LANE) * LANE
            tbc = min(tbc, two_step_cap)

        kernel = functools.partial(
            _pad_kernel_lane_bc, H=H, W=W, Hp=Hp, Wp=Wp)
        out_l = pl.pallas_call(
            kernel,
            out_shape=jax.ShapeDtypeStruct((Hout, Wout, BC), x.dtype),
            grid_spec=pltpu.PrefetchScalarGridSpec(
                num_scalar_prefetch=0,
                grid=(pl.cdiv(BC, tbc),),
                in_specs=[pl.BlockSpec((H, W, tbc), lambda i: (0, 0, i))],
                out_specs=pl.BlockSpec((Hout, Wout, tbc),
                                       lambda i: (0, 0, i)),
            ),
            compiler_params=compiler_params,
            cost_estimate=cost,
        )(x_l)
        return out_l.transpose(2, 0, 1).reshape(B, C, Hout, Wout)

    # ---- Wide-image path: W already lane-dense, keep plane-major layout. ----
    x_f = x.reshape(BC, H, W)
    tbc = int(min(BC, budget_tbc))
    if BC >= 2:
        # Guarantee >= 2 grid steps so both v7x TensorCores get work.
        tbc = min(tbc, (BC + 1) // 2)
    tbc = max(1, tbc)

    kernel = functools.partial(_pad_kernel_bc_lead, H=H, W=W, Hp=Hp, Wp=Wp)
    out_f = pl.pallas_call(
        kernel,
        out_shape=jax.ShapeDtypeStruct((BC, Hout, Wout), x.dtype),
        grid_spec=pltpu.PrefetchScalarGridSpec(
            num_scalar_prefetch=0,
            grid=(pl.cdiv(BC, tbc),),
            in_specs=[pl.BlockSpec((tbc, H, W), lambda i: (i, 0, 0))],
            out_specs=pl.BlockSpec((tbc, Hout, Wout), lambda i: (i, 0, 0)),
        ),
        compiler_params=compiler_params,
        cost_estimate=cost,
    )(x_f)
    return out_f.reshape(B, C, Hout, Wout)


def _reference(x, conv_stride=1, conv_ksize=3):
    B, C, H, W = x.shape
    Hp = int((H * (conv_stride - 1) - conv_stride + conv_ksize) / 2)
    Wp = int((W * (conv_stride - 1) - conv_stride + conv_ksize) / 2)
    return jnp.pad(x, ((0, 0), (0, 0), (Hp, Hp), (Wp, Wp)), mode="edge")


if __name__ == "__main__":
    key = jax.random.PRNGKey(0)

    # Small NCHW input consistent with the module's forward.
    x = jax.random.uniform(key, (2, 4, 16, 16), dtype=jnp.float32)
    out = jax.block_until_ready(same_padding(x, conv_stride=1, conv_ksize=3))
    ref = _reference(x, conv_stride=1, conv_ksize=3)
    assert out.shape == ref.shape, (out.shape, ref.shape)
    assert jnp.allclose(out, ref), "mismatch vs reference replicate pad"

    # Also check the shape used in the original PyTorch snippet (1, 3, 5, 5).
    x2 = jax.random.uniform(jax.random.PRNGKey(1), (1, 3, 5, 5),
                            dtype=jnp.float32)
    out2 = jax.block_until_ready(same_padding(x2, conv_stride=1, conv_ksize=3))
    ref2 = _reference(x2, conv_stride=1, conv_ksize=3)
    assert out2.shape == ref2.shape, (out2.shape, ref2.shape)
    assert jnp.allclose(out2, ref2), "mismatch vs reference replicate pad (5x5)"

    print("KERNEL_OK")
</pallas_src>

<mosaic_0001>
module attributes {stable_mosaic.version = 11 : i64} {
  func.func @_pad_kernel_lane_bc(%arg0: i32, %arg1: memref<16x16x8xf32, #tpu.memory_space<vmem>>, %arg2: memref<18x18x8xf32, #tpu.memory_space<vmem>>) attributes {dimension_semantics = [#tpu.dimension_semantics<parallel>], iteration_bounds = array<i64: 1>, scalar_prefetch = 0 : i64, scratch_operands = 0 : i64, tpu.core_type = #tpu.core_type<tc>, window_params = [{transform_indices = @transform_0, window_bounds = array<i64: 16, 16, 8>}, {transform_indices = @transform_1, window_bounds = array<i64: 18, 18, 8>}]} {
    %c0 = arith.constant 0 : index
    %c0_0 = arith.constant 0 : index
    %c0_1 = arith.constant 0 : index
    %0 = vector.load %arg1[%c0, %c0_0, %c0_1] : memref<16x16x8xf32, #tpu.memory_space<vmem>>, vector<16x16x8xf32>
    %c1 = arith.constant 1 : index
    %c1_2 = arith.constant 1 : index
    %c0_3 = arith.constant 0 : index
    %1 = vector.load %arg2[%c1, %c1_2, %c0_3] : memref<18x18x8xf32, #tpu.memory_space<vmem>>, vector<16x16x8xf32>
    tpu.vector_store %arg2[%c1, %c1_2, %c0_3], %0 {strides = array<i32>} : memref<18x18x8xf32, #tpu.memory_space<vmem>>, vector<16x16x8xf32>,
    %c0_4 = arith.constant 0 : index
    %c0_5 = arith.constant 0 : index
    %c0_6 = arith.constant 0 : index
    %2 = vector.load %arg1[%c0_4, %c0_5, %c0_6] : memref<16x16x8xf32, #tpu.memory_space<vmem>>, vector<16x1x8xf32>
    %c1_7 = arith.constant 1 : index
    %c0_8 = arith.constant 0 : index
    %c0_9 = arith.constant 0 : index
    %3 = vector.load %arg2[%c1_7, %c0_8, %c0_9] : memref<18x18x8xf32, #tpu.memory_space<vmem>>, vector<16x1x8xf32>
    tpu.vector_store %arg2[%c1_7, %c0_8, %c0_9], %2 {strides = array<i32>} : memref<18x18x8xf32, #tpu.memory_space<vmem>>, vector<16x1x8xf32>,
    %c0_10 = arith.constant 0 : index
    %c15 = arith.constant 15 : index
    %c0_11 = arith.constant 0 : index
    %4 = vector.load %arg1[%c0_10, %c15, %c0_11] : memref<16x16x8xf32, #tpu.memory_space<vmem>>, vector<16x1x8xf32>
    %c1_12 = arith.constant 1 : index
    %c17 = arith.constant 17 : index
    %c0_13 = arith.constant 0 : index
    %5 = vector.load %arg2[%c1_12, %c17, %c0_13] : memref<18x18x8xf32, #tpu.memory_space<vmem>>, vector<16x1x8xf32>
    tpu.vector_store %arg2[%c1_12, %c17, %c0_13], %4 {strides = array<i32>} : memref<18x18x8xf32, #tpu.memory_space<vmem>>, vector<16x1x8xf32>,
    %c0_14 = arith.constant 0 : index
    %c0_15 = arith.constant 0 : index
    %c0_16 = arith.constant 0 : index
    %6 = vector.load %arg1[%c0_14, %c0_15, %c0_16] : memref<16x16x8xf32, #tpu.memory_space<vmem>>, vector<1x16x8xf32>
    %c0_17 = arith.constant 0 : index
    %c1_18 = arith.constant 1 : index
    %c0_19 = arith.constant 0 : index
    %7 = vector.load %arg2[%c0_17, %c1_18, %c0_19] : memref<18x18x8xf32, #tpu.memory_space<vmem>>, vector<1x16x8xf32>
    tpu.vector_store %arg2[%c0_17, %c1_18, %c0_19], %6 {strides = array<i32>} : memref<18x18x8xf32, #tpu.memory_space<vmem>>, vector<1x16x8xf32>,
    %c15_20 = arith.constant 15 : index
    %c0_21 = arith.constant 0 : index
    %c0_22 = arith.constant 0 : index
    %8 = vector.load %arg1[%c15_20, %c0_21, %c0_22] : memref<16x16x8xf32, #tpu.memory_space<vmem>>, vector<1x16x8xf32>
    %c17_23 = arith.constant 17 : index
    %c1_24 = arith.constant 1 : index
    %c0_25 = arith.constant 0 : index
    %9 = vector.load %arg2[%c17_23, %c1_24, %c0_25] : memref<18x18x8xf32, #tpu.memory_space<vmem>>, vector<1x16x8xf32>
    tpu.vector_store %arg2[%c17_23, %c1_24, %c0_25], %8 {strides = array<i32>} : memref<18x18x8xf32, #tpu.memory_space<vmem>>, vector<1x16x8xf32>,
    %c0_26 = arith.constant 0 : index
    %c0_27 = arith.constant 0 : index
    %c0_28 = arith.constant 0 : index
    %10 = vector.load %arg1[%c0_26, %c0_27, %c0_28] : memref<16x16x8xf32, #tpu.memory_space<vmem>>, vector<1x1x8xf32>
    %c0_29 = arith.constant 0 : index
    %c0_30 = arith.constant 0 : index
    %c0_31 = arith.constant 0 : index
    %11 = vector.load %arg2[%c0_29, %c0_30, %c0_31] : memref<18x18x8xf32, #tpu.memory_space<vmem>>, vector<1x1x8xf32>
    tpu.vector_store %arg2[%c0_29, %c0_30, %c0_31], %10 {strides = array<i32>} : memref<18x18x8xf32, #tpu.memory_space<vmem>>, vector<1x1x8xf32>,
    %c0_32 = arith.constant 0 : index
    %c15_33 = arith.constant 15 : index
    %c0_34 = arith.constant 0 : index
    %12 = vector.load %arg1[%c0_32, %c15_33, %c0_34] : memref<16x16x8xf32, #tpu.memory_space<vmem>>, vector<1x1x8xf32>
    %c0_35 = arith.constant 0 : index
    %c17_36 = arith.constant 17 : index
    %c0_37 = arith.constant 0 : index
    %13 = vector.load %arg2[%c0_35, %c17_36, %c0_37] : memref<18x18x8xf32, #tpu.memory_space<vmem>>, vector<1x1x8xf32>
    tpu.vector_store %arg2[%c0_35, %c17_36, %c0_37], %12 {strides = array<i32>} : memref<18x18x8xf32, #tpu.memory_space<vmem>>, vector<1x1x8xf32>,
    %c15_38 = arith.constant 15 : index
    %c0_39 = arith.constant 0 : index
    %c0_40 = arith.constant 0 : index
    %14 = vector.load %arg1[%c15_38, %c0_39, %c0_40] : memref<16x16x8xf32, #tpu.memory_space<vmem>>, vector<1x1x8xf32>
    %c17_41 = arith.constant 17 : index
    %c0_42 = arith.constant 0 : index
    %c0_43 = arith.constant 0 : index
    %15 = vector.load %arg2[%c17_41, %c0_42, %c0_43] : memref<18x18x8xf32, #tpu.memory_space<vmem>>, vector<1x1x8xf32>
    tpu.vector_store %arg2[%c17_41, %c0_42, %c0_43], %14 {strides = array<i32>} : memref<18x18x8xf32, #tpu.memory_space<vmem>>, vector<1x1x8xf32>,
    %c15_44 = arith.constant 15 : index
    %c15_45 = arith.constant 15 : index
    %c0_46 = arith.constant 0 : index
    %16 = vector.load %arg1[%c15_44, %c15_45, %c0_46] : memref<16x16x8xf32, #tpu.memory_space<vmem>>, vector<1x1x8xf32>
    %c17_47 = arith.constant 17 : index
    %c17_48 = arith.constant 17 : index
    %c0_49 = arith.constant 0 : index
    %17 = vector.load %arg2[%c17_47, %c17_48, %c0_49] : memref<18x18x8xf32, #tpu.memory_space<vmem>>, vector<1x1x8xf32>
    tpu.vector_store %arg2[%c17_47, %c17_48, %c0_49], %16 {strides = array<i32>} : memref<18x18x8xf32, #tpu.memory_space<vmem>>, vector<1x1x8xf32>,
    return
  }
  func.func @transform_0(%arg0: i32) -> (i32, i32, i32) {
    %c0_i32 = arith.constant 0 : i32
    %c0_i32_0 = arith.constant 0 : i32
    %c0_i32_1 = arith.constant 0 : i32
    return %c0_i32, %c0_i32_0, %arg0 : i32, i32, i32
  }
  func.func @transform_1(%arg0: i32) -> (i32, i32, i32) {
    %c0_i32 = arith.constant 0 : i32
    %c0_i32_0 = arith.constant 0 : i32
    %c0_i32_1 = arith.constant 0 : i32
    return %c0_i32, %c0_i32_0, %arg0 : i32, i32, i32
  }
}

</mosaic_0001>

<llo_original>
// kernel: tpu_custom_call.1
$region0: #{tpu_custom_call.1}
  #allocation0 [shape = 'u32[]', space=smem, size = 0x4, offset = 0x4, fixed_abs, tag = 'smem constant byte address 0x4 - core index']
  #allocation1 [shape = 'u32[144,128]{1,0:T(1,128)}', space=vmem, size = 0x12000, scoped, tag = 'internal scratch']
  %s0 = inlined_call_operand.vmem [shape: f32[16,16,8], index: 0, kind: input, shape index: {}]
  %s1 = inlined_call_operand.vmem [shape: f32[18,18,8], index: 1, kind: output, shape index: {}]
  %s2 = sld [smem:[#allocation0]]
  $region14: #{tpu_custom_call.1} parent=0
    _
  %s4 = ssub.s32 1, %s2
  %s5 = scalar_select 0, %s4, %s2
  // Predicated region
  $region2: #{tpu_custom_call.1} parent=0 // pred_check
    _
  $region3: #{tpu_custom_call.1} parent=0 // pred_check_branch
    %7 = sbr.rel (0) target = $region5
  $region4: #{tpu_custom_call.1} parent=0 // pred_region
    _
  $region5: #{tpu_custom_call.1} parent=0 // pred_fallthru
    _
  %v8 = vld [vmem:[%s0] sm:$0xff]
  %v9 = vld [vmem:[%s0 + $0x8] sm:$0xff]
  %v10 = vld [vmem:[%s0 + $0x10] sm:$0xff]
  %v11 = vld [vmem:[%s0 + $0x18] sm:$0xff]
  %v12 = vld [vmem:[%s0 + $0x20] sm:$0xff]
  %v13 = vld [vmem:[%s0 + $0x28] sm:$0xff]
  %v14 = vld [vmem:[%s0 + $0x30] sm:$0xff]
  %v15 = vld [vmem:[%s0 + $0x38] sm:$0xff]
  %v16 = vld [vmem:[%s0 + $0x40] sm:$0xff]
  %v17 = vld [vmem:[%s0 + $0x48] sm:$0xff]
  %v18 = vld [vmem:[%s0 + $0x50] sm:$0xff]
  %v19 = vld [vmem:[%s0 + $0x58] sm:$0xff]
  %v20 = vld [vmem:[%s0 + $0x60] sm:$0xff]
  %v21 = vld [vmem:[%s0 + $0x68] sm:$0xff]
  %v22 = vld [vmem:[%s0 + $0x70] sm:$0xff]
  %v23 = vld [vmem:[%s0 + $0x78] sm:$0xff]
  %v24 = vld [vmem:[%s0 + $0x80] sm:$0xff]
  %v25 = vld [vmem:[%s0 + $0x88] sm:$0xff]
  %v26 = vld [vmem:[%s0 + $0x90] sm:$0xff]
  %v27 = vld [vmem:[%s0 + $0x98] sm:$0xff]
  %v28 = vld [vmem:[%s0 + $0xa0] sm:$0xff]
  %v29 = vld [vmem:[%s0 + $0xa8] sm:$0xff]
  %v30 = vld [vmem:[%s0 + $0xb0] sm:$0xff]
  %v31 = vld [vmem:[%s0 + $0xb8] sm:$0xff]
  %v32 = vld [vmem:[%s0 + $0xc0] sm:$0xff]
  %v33 = vld [vmem:[%s0 + $0xc8] sm:$0xff]
  %v34 = vld [vmem:[%s0 + $0xd0] sm:$0xff]
  %v35 = vld [vmem:[%s0 + $0xd8] sm:$0xff]
  %v36 = vld [vmem:[%s0 + $0xe0] sm:$0xff]
  %v37 = vld [vmem:[%s0 + $0xe8] sm:$0xff]
  %v38 = vld [vmem:[%s0 + $0xf0] sm:$0xff]
  %v39 = vld [vmem:[%s0 + $0xf8] sm:$0xff]
  %s40 = scalar_lea.vmem %s1, 24
  %vm41 = vcmask 64512
  %42 = vst.msk [vmem:[%s40 + $0x1] sm:$0xff] %vm41, %v8
  %43 = vst.msk [vmem:[%s40 + $0x9] sm:$0xff] %vm41, %v9
  %44 = vst.msk [vmem:[%s40 + $0x19] sm:$0xff] %vm41, %v10
  %45 = vst.msk [vmem:[%s40 + $0x21] sm:$0xff] %vm41, %v11
  %46 = vst.msk [vmem:[%s40 + $0x31] sm:$0xff] %vm41, %v12
  %47 = vst.msk [vmem:[%s40 + $0x39] sm:$0xff] %vm41, %v13
  %48 = vst.msk [vmem:[%s40 + $0x49] sm:$0xff] %vm41, %v14
  %49 = vst.msk [vmem:[%s40 + $0x51] sm:$0xff] %vm41, %v15
  %50 = vst.msk [vmem:[%s40 + $0x61] sm:$0xff] %vm41, %v16
  %51 = vst.msk [vmem:[%s40 + $0x69] sm:$0xff] %vm41, %v17
  %52 = vst.msk [vmem:[%s40 + $0x79] sm:$0xff] %vm41, %v18
  %53 = vst.msk [vmem:[%s40 + $0x81] sm:$0xff] %vm41, %v19
  %54 = vst.msk [vmem:[%s40 + $0x91] sm:$0xff] %vm41, %v20
  %55 = vst.msk [vmem:[%s40 + $0x99] sm:$0xff] %vm41, %v21
  %56 = vst.msk [vmem:[%s40 + $0xa9] sm:$0xff] %vm41, %v22
  %57 = vst.msk [vmem:[%s40 + $0xb1] sm:$0xff] %vm41, %v23
  %58 = vst.msk [vmem:[%s40 + $0xc1] sm:$0xff] %vm41, %v24
  %59 = vst.msk [vmem:[%s40 + $0xc9] sm:$0xff] %vm41, %v25
  %60 = vst.msk [vmem:[%s40 + $0xd9] sm:$0xff] %vm41, %v26
  %61 = vst.msk [vmem:[%s40 + $0xe1] sm:$0xff] %vm41, %v27
  %62 = vst.msk [vmem:[%s40 + $0xf1] sm:$0xff] %vm41, %v28
  %63 = vst.msk [vmem:[%s40 + $0xf9] sm:$0xff] %vm41, %v29
  %64 = vst.msk [vmem:[%s40 + $0x109] sm:$0xff] %vm41, %v30
  %65 = vst.msk [vmem:[%s40 + $0x111] sm:$0xff] %vm41, %v31
  %66 = vst.msk [vmem:[%s40 + $0x121] sm:$0xff] %vm41, %v32
  %67 = vst.msk [vmem:[%s40 + $0x129] sm:$0xff] %vm41, %v33
  %68 = vst.msk [vmem:[%s40 + $0x139] sm:$0xff] %vm41, %v34
  %69 = vst.msk [vmem:[%s40 + $0x141] sm:$0xff] %vm41, %v35
  %70 = vst.msk [vmem:[%s40 + $0x151] sm:$0xff] %vm41, %v36
  %71 = vst.msk [vmem:[%s40 + $0x159] sm:$0xff] %vm41, %v37
  %72 = vst.msk [vmem:[%s40 + $0x169] sm:$0xff] %vm41, %v38
  %73 = vst.msk [vmem:[%s40 + $0x171] sm:$0xff] %vm41, %v39
  %v74 = vld [vmem:[%s0] sm:$0x1]
  %v75 = vld [vmem:[%s0 + $0x10] sm:$0x1]
  %v76 = vld [vmem:[%s0 + $0x20] sm:$0x1]
  %v77 = vld [vmem:[%s0 + $0x30] sm:$0x1]
  %v78 = vld [vmem:[%s0 + $0x40] sm:$0x1]
  %v79 = vld [vmem:[%s0 + $0x50] sm:$0x1]
  %v80 = vld [vmem:[%s0 + $0x60] sm:$0x1]
  %v81 = vld [vmem:[%s0 + $0x70] sm:$0x1]
  %v82 = vld [vmem:[%s0 + $0x80] sm:$0x1]
  %v83 = vld [vmem:[%s0 + $0x90] sm:$0x1]
  %v84 = vld [vmem:[%s0 + $0xa0] sm:$0x1]
  %v85 = vld [vmem:[%s0 + $0xb0] sm:$0x1]
  %v86 = vld [vmem:[%s0 + $0xc0] sm:$0x1]
  %v87 = vld [vmem:[%s0 + $0xd0] sm:$0x1]
  %v88 = vld [vmem:[%s0 + $0xe0] sm:$0x1]
  %v89 = vld [vmem:[%s0 + $0xf0] sm:$0x1]
  %vm90 = vcmask 57344
  %91 = vst.msk [vmem:[%s40] sm:$0x1] %vm90, %v74
  %92 = vst.msk [vmem:[%s40 + $0x18] sm:$0x1] %vm90, %v75
  %93 = vst.msk [vmem:[%s40 + $0x30] sm:$0x1] %vm90, %v76
  %94 = vst.msk [vmem:[%s40 + $0x48] sm:$0x1] %vm90, %v77
  %95 = vst.msk [vmem:[%s40 + $0x60] sm:$0x1] %vm90, %v78
  %96 = vst.msk [vmem:[%s40 + $0x78] sm:$0x1] %vm90, %v79
  %97 = vst.msk [vmem:[%s40 + $0x90] sm:$0x1] %vm90, %v80
  %98 = vst.msk [vmem:[%s40 + $0xa8] sm:$0x1] %vm90, %v81
  %99 = vst.msk [vmem:[%s40 + $0xc0] sm:$0x1] %vm90, %v82
  %100 = vst.msk [vmem:[%s40 + $0xd8] sm:$0x1] %vm90, %v83
  %101 = vst.msk [vmem:[%s40 + $0xf0] sm:$0x1] %vm90, %v84
  %102 = vst.msk [vmem:[%s40 + $0x108] sm:$0x1] %vm90, %v85
  %103 = vst.msk [vmem:[%s40 + $0x120] sm:$0x1] %vm90, %v86
  %104 = vst.msk [vmem:[%s40 + $0x138] sm:$0x1] %vm90, %v87
  %105 = vst.msk [vmem:[%s40 + $0x150] sm:$0x1] %vm90, %v88
  %106 = vst.msk [vmem:[%s40 + $0x168] sm:$0x1] %vm90, %v89
  %v107 = vld [vmem:[%s0 + $0xf] sm:$0x1]
  %v108 = vld [vmem:[%s0 + $0x1f] sm:$0x1]
  %v109 = vld [vmem:[%s0 + $0x2f] sm:$0x1]
  %v110 = vld [vmem:[%s0 + $0x3f] sm:$0x1]
  %v111 = vld [vmem:[%s0 + $0x4f] sm:$0x1]
  %v112 = vld [vmem:[%s0 + $0x5f] sm:$0x1]
  %v113 = vld [vmem:[%s0 + $0x6f] sm:$0x1]
  %v114 = vld [vmem:[%s0 + $0x7f] sm:$0x1]
  %v115 = vld [vmem:[%s0 + $0x8f] sm:$0x1]
  %v116 = vld [vmem:[%s0 + $0x9f] sm:$0x1]
  %v117 = vld [vmem:[%s0 + $0xaf] sm:$0x1]
  %v118 = vld [vmem:[%s0 + $0xbf] sm:$0x1]
  %v119 = vld [vmem:[%s0 + $0xcf] sm:$0x1]
  %v120 = vld [vmem:[%s0 + $0xdf] sm:$0x1]
  %v121 = vld [vmem:[%s0 + $0xef] sm:$0x1]
  %v122 = vld [vmem:[%s0 + $0xff] sm:$0x1]
  %123 = vst.msk [vmem:[%s40 + $0x11] sm:$0x1] %vm90, %v107
  %124 = vst.msk [vmem:[%s40 + $0x29] sm:$0x1] %vm90, %v108
  %125 = vst.msk [vmem:[%s40 + $0x41] sm:$0x1] %vm90, %v109
  %126 = vst.msk [vmem:[%s40 + $0x59] sm:$0x1] %vm90, %v110
  %127 = vst.msk [vmem:[%s40 + $0x71] sm:$0x1] %vm90, %v111
  %128 = vst.msk [vmem:[%s40 + $0x89] sm:$0x1] %vm90, %v112
  %129 = vst.msk [vmem:[%s40 + $0xa1] sm:$0x1] %vm90, %v113
  %130 = vst.msk [vmem:[%s40 + $0xb9] sm:$0x1] %vm90, %v114
  %131 = vst.msk [vmem:[%s40 + $0xd1] sm:$0x1] %vm90, %v115
  %132 = vst.msk [vmem:[%s40 + $0xe9] sm:$0x1] %vm90, %v116
  %133 = vst.msk [vmem:[%s40 + $0x101] sm:$0x1] %vm90, %v117
  %134 = vst.msk [vmem:[%s40 + $0x119] sm:$0x1] %vm90, %v118
  %135 = vst.msk [vmem:[%s40 + $0x131] sm:$0x1] %vm90, %v119
  %136 = vst.msk [vmem:[%s40 + $0x149] sm:$0x1] %vm90, %v120
  %137 = vst.msk [vmem:[%s40 + $0x161] sm:$0x1] %vm90, %v121
  %138 = vst.msk [vmem:[%s40 + $0x179] sm:$0x1] %vm90, %v122
  %v139 = vld [vmem:[%s0] sm:$0xff]
  %v140 = vld [vmem:[%s0 + $0x8] sm:$0xff]
  %141 = vst.msk [vmem:[%s1 + $0x1] sm:$0xff] %vm41, %v139
  %142 = vst.msk [vmem:[%s1 + $0x9] sm:$0xff] %vm41, %v140
  %s143 = scalar_lea.vmem %s0, 240
  %v144 = vld [vmem:[%s143] sm:$0xff]
  %v145 = vld [vmem:[%s143 + $0x8] sm:$0xff]
  %s146 = scalar_lea.vmem %s1, 408
  %147 = vst.msk [vmem:[%s146 + $0x1] sm:$0xff] %vm41, %v144
  %148 = vst.msk [vmem:[%s146 + $0x9] sm:$0xff] %vm41, %v145
  %v149 = vld [vmem:[%s0] sm:$0x1]
  %150 = vst.msk [vmem:[%s1] sm:$0x1] %vm90, %v149
  %v151 = vld [vmem:[%s0 + $0xf] sm:$0x1]
  %152 = vst.msk [vmem:[%s1 + $0x11] sm:$0x1] %vm90, %v151
  %v153 = vld [vmem:[%s143] sm:$0x1]
  %154 = vst.msk [vmem:[%s146] sm:$0x1] %vm90, %v153
  %v155 = vld [vmem:[%s143 + $0xf] sm:$0x1]
  %156 = vst.msk [vmem:[%s146 + $0x11] sm:$0x1] %vm90, %v155
  // Predicated region
  $region6: #{tpu_custom_call.1} parent=0 // pred_check
    _
  $region7: #{tpu_custom_call.1} parent=0 // pred_check_branch
    %158 = sbr.rel (0) target = $region9
  $region8: #{tpu_custom_call.1} parent=0 // pred_region
    _
  $region9: #{tpu_custom_call.1} parent=0 // pred_fallthru
    _
  // Predicated region
  $region10: #{tpu_custom_call.1} parent=0 // pred_check
    _
  $region11: #{tpu_custom_call.1} parent=0 // pred_check_branch
    %160 = sbr.rel (0) target = $region13
  $region12: #{tpu_custom_call.1} parent=0 // pred_region
    _
  $region13: #{tpu_custom_call.1} parent=0 // pred_fallthru
    _

</llo_original>
